<compile_context>
chip_gen: v7x
topology: tpu7x:2x2x1
jax: 0.10.0
libtpu: 0.0.40
codegen_flags: <defaults>
</compile_context>

<pallas_src>
import functools

import jax
import jax.numpy as jnp
from jax import lax
from jax.experimental import pallas as pl
from jax.experimental.pallas import tpu as pltpu

LANE = 128  # lane width / padded feature width for every packed matrix


# ----------------------------------------------------------------------------
# Parameter init (raw, PyTorch-style) and offline packing/folding
# ----------------------------------------------------------------------------
def init_params(key, data_input_dim, vocab_size, embedding_dim,
                hidden_dim, action_size, max_seq_length):
    """Deterministic PyTorch-style init. Linear weights stored as (in, out)."""
    keys = jax.random.split(key, 13)

    def linear(kw, kb, fan_in, fan_out):
        bound = 1.0 / (fan_in ** 0.5)
        w = jax.random.uniform(kw, (fan_in, fan_out), jnp.float32, -bound, bound)
        b = jax.random.uniform(kb, (1, fan_out), jnp.float32, -bound, bound)
        return w, b

    p = {}
    p["emb"] = jax.random.normal(keys[0], (vocab_size, embedding_dim), jnp.float32)
    p["wd1"], p["bd1"] = linear(keys[1], keys[2], data_input_dim, hidden_dim)
    p["wd2"], p["bd2"] = linear(keys[3], keys[4], hidden_dim, hidden_dim)
    p["wt1"], p["bt1"] = linear(keys[5], keys[6], embedding_dim * max_seq_length, hidden_dim)
    p["wt2"], p["bt2"] = linear(keys[7], keys[8], hidden_dim, hidden_dim)
    p["wf"], p["bf"] = linear(keys[9], keys[10], 2 * hidden_dim, hidden_dim)
    p["wfc"], p["bfc"] = linear(keys[11], keys[12], hidden_dim, action_size)
    return p


def _slab_layout(vl_pad, lane=LANE):
    """Row offsets inside the packed weight slab; every section 8-row aligned."""
    sections = [("wvt1", vl_pad), ("bt1", 1), ("wtf", lane), ("wfc", lane), ("bfc", 1)]
    offs, r = {}, 0
    for name, n in sections:
        offs[name] = r
        r = ((r + n + 7) // 8) * 8
    return offs, r


def pack_params(p, lane=LANE):
    """Offline fold + pack.

    Returns:
      slab:      (rows, 128) bf16 — everything the kernel needs (tree path).
      data_path: small f32 mats used by the wrapper for the batch-invariant
                 data-encoder term (hoisted out of the kernel).
      meta:      static layout metadata.
    """
    HI = lax.Precision.HIGHEST
    H = p["wd1"].shape[1]
    emb, wt1 = p["emb"], p["wt1"]
    V, E = emb.shape
    L = wt1.shape[0] // E
    A = p["wfc"].shape[1]
    d_in = p["wd1"].shape[0]
    vl = V * L
    vl_pad = ((vl + lane - 1) // lane) * lane          # lane-aligned MXU K dim

    # Fold embedding + tree Linear0:  wvt1[v*L + l, :] = emb[v, :] @ wt1[l*E:(l+1)*E, :]
    wvt1 = jnp.einsum("ve,leh->vlh", emb, wt1.reshape(L, E, H),
                      precision=HI).reshape(vl, H)

    # Fold the linear-linear chains across the concat + fusion (no nonlinearity
    # in between, algebraically exact):
    #   fused = relu(h_d @ (wd2@wf1) + h_t @ (wt2@wf2) + (bd2@wf1 + bt2@wf2 + bf))
    wf1, wf2 = p["wf"][:H, :], p["wf"][H:, :]
    wdf = jnp.dot(p["wd2"], wf1, precision=HI)                         # (H, H)
    wtf = jnp.dot(p["wt2"], wf2, precision=HI)                         # (H, H)
    bfu = (jnp.dot(p["bd2"], wf1, precision=HI)
           + jnp.dot(p["bt2"], wf2, precision=HI) + p["bf"])           # (1, H)

    offs, rows = _slab_layout(vl_pad, lane)
    slab = jnp.zeros((rows, lane), jnp.bfloat16)

    def put(slab, name, mat):
        r0 = offs[name]
        return slab.at[r0:r0 + mat.shape[0], :mat.shape[1]].set(mat.astype(jnp.bfloat16))

    slab = put(slab, "wvt1", wvt1)
    slab = put(slab, "bt1", p["bt1"])
    slab = put(slab, "wtf", wtf)
    slab = put(slab, "wfc", p["wfc"])
    slab = put(slab, "bfc", p["bfc"])

    # Batch-invariant data-encoder path: stays f32, evaluated in the wrapper.
    data_path = dict(wd1=p["wd1"], bd1=p["bd1"], wdf=wdf, bfu=bfu)

    meta = dict(offs=offs, rows=rows, d_in=d_in, L=L, V=V, vl=vl,
                vl_pad=vl_pad, A=A, lane=lane, H=H)
    return slab, data_path, meta


# ----------------------------------------------------------------------------
# Kernel
# ----------------------------------------------------------------------------
def _dqn_kernel(state_ref, dterm_ref, slab_ref, q_ref, *, offs, vl_pad, L, lane):
    f32, bf16 = jnp.float32, jnp.bfloat16

    def w(name, nrows):                       # static, 8-row-aligned slab views
        r0 = offs[name]
        return slab_ref[r0:r0 + nrows, :]

    def b(name):
        r0 = offs[name]
        return slab_ref[r0:r0 + 1, :]

    # ---- tree encoder with the embedding gather folded in ------------------
    # selector[b, v*L + l] = 1 iff state[b, l] == v  (built on the VPU, bf16).
    # Out-of-range token ids simply contribute zero (nn.Embedding would error).
    st = state_ref[...]                                         # (tb, L) int32
    tb = st.shape[0]
    lane_iota = lax.broadcasted_iota(jnp.int32, (tb, vl_pad), 1)
    hit = lane_iota == (st[:, 0:1] * L + 0)
    for l in range(1, L):                                       # static unroll, L small
        hit = jnp.logical_or(hit, lane_iota == (st[:, l:l + 1] * L + l))
    sel = hit.astype(bf16)                                      # (tb, vl_pad)

    h_t = jnp.maximum(
        jnp.dot(sel, w("wvt1", vl_pad), preferred_element_type=f32) + b("bt1"),
        0.0).astype(bf16)                                       # (tb, 128)

    # ---- fusion (data-encoder term precomputed in the wrapper) -------------
    # dterm broadcast over the batch tile == the torch .expand + cat + Linear.
    fused = jnp.maximum(
        jnp.dot(h_t, w("wtf", lane), preferred_element_type=f32) + dterm_ref[...],
        0.0).astype(bf16)                                       # (tb, 128)

    # ---- final fc, lane-dense padded output ---------------------------------
    q_ref[...] = (jnp.dot(fused, w("wfc", lane), preferred_element_type=f32)
                  + b("bfc")).astype(q_ref.dtype)               # (tb, 128)


# ----------------------------------------------------------------------------
# Wrapper
# ----------------------------------------------------------------------------
def dqn_forward(packed, data_input, state):
    """data_input: (1, D_in) f32; state: (B, L) int32 token ids -> (B, A) f32."""
    slab, data_path, meta = packed
    B, L = state.shape
    assert L == meta["L"]
    lane, rows, A = meta["lane"], meta["rows"], meta["A"]
    vl_pad, H = meta["vl_pad"], meta["H"]

    # ---- batch-invariant data-encoder path, hoisted out of the kernel ------
    hi = lax.Precision.HIGHEST
    h_d = jnp.maximum(jnp.dot(data_input, data_path["wd1"], precision=hi)
                      + data_path["bd1"], 0.0)
    d_term = jnp.dot(h_d, data_path["wdf"], precision=hi) + data_path["bfu"]   # (1, H)
    d_term = jnp.pad(d_term, ((0, 0), (0, lane - H)))                          # (1, 128)

    # ---- batch tiling: pad B up to a multiple of the tile (no tb=8 fallback);
    # ensure >=2 "parallel" grid steps when the batch is big enough so v7x's
    # second TensorCore is used. Tiles capped at 512 rows (VMEM is ample).
    B8 = ((B + 7) // 8) * 8
    tb = min(B8, 512)
    if B8 >= 16 and B8 // tb < 2:
        tb = ((B8 // 2 + 7) // 8) * 8
    steps = pl.cdiv(B8, tb)
    Bp = steps * tb
    if Bp != B:
        state = jnp.pad(state, ((0, Bp - B), (0, 0)))   # pad rows with token id 0

    kernel = functools.partial(_dqn_kernel, offs=meta["offs"],
                               vl_pad=vl_pad, L=L, lane=lane)

    flops = 2 * Bp * lane * (vl_pad + lane + lane)
    bytes_accessed = (slab.size * 2 + state.size * 4 + d_term.size * 4
                      + Bp * lane * 4)

    q_pad = pl.pallas_call(
        kernel,
        out_shape=jax.ShapeDtypeStruct((Bp, lane), jnp.float32),
        grid=(steps,),
        in_specs=[
            pl.BlockSpec((tb, L), lambda i: (i, 0)),         # token ids
            pl.BlockSpec((1, lane), lambda i: (0, 0)),       # data-encoder term (resident)
            pl.BlockSpec((rows, lane), lambda i: (0, 0)),    # packed bf16 weight slab (resident)
        ],
        out_specs=pl.BlockSpec((tb, lane), lambda i: (i, 0)),
        compiler_params=pltpu.CompilerParams(
            dimension_semantics=("parallel",),
            vmem_limit_bytes=64 * 1024 * 1024,
        ),
        cost_estimate=pl.CostEstimate(flops=flops, transcendentals=0,
                                      bytes_accessed=bytes_accessed),
    )(state, d_term, slab)

    # Downstream consumers that can take the padded (Bp, 128) slab could skip
    # this slice; kept here to match the module's (B, A) contract.
    return q_pad[:B, :A]


# ----------------------------------------------------------------------------
# Pure-JAX reference mirroring the PyTorch forward exactly (f32, unfolded)
# ----------------------------------------------------------------------------
def dqn_forward_ref(params, data_input, state):
    B, L = state.shape
    E = params["emb"].shape[1]
    h = jnp.maximum(data_input @ params["wd1"] + params["bd1"], 0.0)
    d_emb = h @ params["wd2"] + params["bd2"]                       # (1, H)
    x = jnp.take(params["emb"], state, axis=0).reshape(B, L * E)
    t = jnp.maximum(x @ params["wt1"] + params["bt1"], 0.0)
    t_emb = t @ params["wt2"] + params["bt2"]                       # (B, H)
    combined = jnp.concatenate(
        [jnp.broadcast_to(d_emb, t_emb.shape), t_emb], axis=1)      # .expand + cat
    fused = jnp.maximum(combined @ params["wf"] + params["bf"], 0.0)
    return fused @ params["wfc"] + params["bfc"]


if __name__ == "__main__":
    # Small synthetic sizes consistent with the module's constructor.
    DATA_INPUT_DIM = 16
    VOCAB_SIZE = 32
    EMBEDDING_DIM = 8
    HIDDEN_DIM = 32
    ACTION_SIZE = 8
    MAX_SEQ_LENGTH = 8
    BATCH = 2

    key = jax.random.PRNGKey(0)
    kp, kd, ks = jax.random.split(key, 3)

    params = init_params(kp, DATA_INPUT_DIM, VOCAB_SIZE, EMBEDDING_DIM,
                         HIDDEN_DIM, ACTION_SIZE, MAX_SEQ_LENGTH)
    packed = pack_params(params)   # offline fold + single bf16-slab packing

    data_input = jax.random.normal(kd, (1, DATA_INPUT_DIM), jnp.float32)
    state = jax.random.randint(ks, (BATCH, MAX_SEQ_LENGTH), 0, VOCAB_SIZE, jnp.int32)

    q = jax.block_until_ready(dqn_forward(packed, data_input, state))
    q_ref = jax.block_until_ready(dqn_forward_ref(params, data_input, state))

    assert q.shape == (BATCH, ACTION_SIZE)
    # bf16 weight storage + folded f32 summation order: looser tolerance than a
    # pure-f32 kernel, but still well inside bf16's expected rounding envelope.
    assert jnp.allclose(q, q_ref, atol=5e-2, rtol=5e-2), "mismatch vs reference"

    # TODO(synk): the epsilon-greedy `act()` path (python RNG + masked argmax) is
    # host-side control flow and is intentionally not part of the kernel.
    print("KERNEL_OK")
</pallas_src>

<mosaic_0001>
module attributes {stable_mosaic.version = 11 : i64} {
  func.func @_dqn_kernel(%arg0: i32, %arg1: memref<8x8xi32, #tpu.memory_space<vmem>>, %arg2: memref<1x128xf32, #tpu.memory_space<vmem>>, %arg3: memref<528x128xbf16, #tpu.memory_space<vmem>>, %arg4: memref<8x128xf32, #tpu.memory_space<vmem>>) attributes {dimension_semantics = [#tpu.dimension_semantics<parallel>], iteration_bounds = array<i64: 1>, scalar_prefetch = 0 : i64, scratch_operands = 0 : i64, tpu.core_type = #tpu.core_type<tc>, window_params = [{transform_indices = @transform_0, window_bounds = array<i64: 8, 8>}, {pipeline_mode = #tpu.pipeline_mode<synchronous>, transform_indices = @transform_1, window_bounds = array<i64: 1, 128>}, {pipeline_mode = #tpu.pipeline_mode<synchronous>, transform_indices = @transform_2, window_bounds = array<i64: 528, 128>}, {transform_indices = @transform_3, window_bounds = array<i64: 8, 128>}]} {
    %c0 = arith.constant 0 : index
    %c0_0 = arith.constant 0 : index
    %0 = vector.load %arg1[%c0, %c0_0] : memref<8x8xi32, #tpu.memory_space<vmem>>, vector<8x8xi32>
    %1 = tpu.iota {dimensions = array<i32: 1>} : vector<8x256xi32>
    %2 = vector.extract_strided_slice %0 {offsets = [0, 0], sizes = [8, 1], strides = [1, 1]} : vector<8x8xi32> to vector<8x1xi32>
    %c8_i32 = arith.constant 8 : i32
    %3 = vector.broadcast %c8_i32 : i32 to vector<8x1xi32>
    %4 = arith.muli %2, %3 : vector<8x1xi32>
    %c0_i32 = arith.constant 0 : i32
    %5 = vector.broadcast %c0_i32 : i32 to vector<8x1xi32>
    %6 = arith.addi %4, %5 : vector<8x1xi32>
    %7 = vector.broadcast %6 : vector<8x1xi32> to vector<8x256xi32>
    %8 = arith.cmpi eq, %1, %7 : vector<8x256xi32>
    %9 = vector.extract_strided_slice %0 {offsets = [0, 1], sizes = [8, 1], strides = [1, 1]} : vector<8x8xi32> to vector<8x1xi32>
    %c8_i32_1 = arith.constant 8 : i32
    %10 = vector.broadcast %c8_i32_1 : i32 to vector<8x1xi32>
    %11 = arith.muli %9, %10 : vector<8x1xi32>
    %c1_i32 = arith.constant 1 : i32
    %12 = vector.broadcast %c1_i32 : i32 to vector<8x1xi32>
    %13 = arith.addi %11, %12 : vector<8x1xi32>
    %14 = vector.broadcast %13 : vector<8x1xi32> to vector<8x256xi32>
    %15 = arith.cmpi eq, %1, %14 : vector<8x256xi32>
    %16 = arith.ori %8, %15 : vector<8x256xi1>
    %17 = vector.extract_strided_slice %0 {offsets = [0, 2], sizes = [8, 1], strides = [1, 1]} : vector<8x8xi32> to vector<8x1xi32>
    %c8_i32_2 = arith.constant 8 : i32
    %18 = vector.broadcast %c8_i32_2 : i32 to vector<8x1xi32>
    %19 = arith.muli %17, %18 : vector<8x1xi32>
    %c2_i32 = arith.constant 2 : i32
    %20 = vector.broadcast %c2_i32 : i32 to vector<8x1xi32>
    %21 = arith.addi %19, %20 : vector<8x1xi32>
    %22 = vector.broadcast %21 : vector<8x1xi32> to vector<8x256xi32>
    %23 = arith.cmpi eq, %1, %22 : vector<8x256xi32>
    %24 = arith.ori %16, %23 : vector<8x256xi1>
    %25 = vector.extract_strided_slice %0 {offsets = [0, 3], sizes = [8, 1], strides = [1, 1]} : vector<8x8xi32> to vector<8x1xi32>
    %c8_i32_3 = arith.constant 8 : i32
    %26 = vector.broadcast %c8_i32_3 : i32 to vector<8x1xi32>
    %27 = arith.muli %25, %26 : vector<8x1xi32>
    %c3_i32 = arith.constant 3 : i32
    %28 = vector.broadcast %c3_i32 : i32 to vector<8x1xi32>
    %29 = arith.addi %27, %28 : vector<8x1xi32>
    %30 = vector.broadcast %29 : vector<8x1xi32> to vector<8x256xi32>
    %31 = arith.cmpi eq, %1, %30 : vector<8x256xi32>
    %32 = arith.ori %24, %31 : vector<8x256xi1>
    %33 = vector.extract_strided_slice %0 {offsets = [0, 4], sizes = [8, 1], strides = [1, 1]} : vector<8x8xi32> to vector<8x1xi32>
    %c8_i32_4 = arith.constant 8 : i32
    %34 = vector.broadcast %c8_i32_4 : i32 to vector<8x1xi32>
    %35 = arith.muli %33, %34 : vector<8x1xi32>
    %c4_i32 = arith.constant 4 : i32
    %36 = vector.broadcast %c4_i32 : i32 to vector<8x1xi32>
    %37 = arith.addi %35, %36 : vector<8x1xi32>
    %38 = vector.broadcast %37 : vector<8x1xi32> to vector<8x256xi32>
    %39 = arith.cmpi eq, %1, %38 : vector<8x256xi32>
    %40 = arith.ori %32, %39 : vector<8x256xi1>
    %41 = vector.extract_strided_slice %0 {offsets = [0, 5], sizes = [8, 1], strides = [1, 1]} : vector<8x8xi32> to vector<8x1xi32>
    %c8_i32_5 = arith.constant 8 : i32
    %42 = vector.broadcast %c8_i32_5 : i32 to vector<8x1xi32>
    %43 = arith.muli %41, %42 : vector<8x1xi32>
    %c5_i32 = arith.constant 5 : i32
    %44 = vector.broadcast %c5_i32 : i32 to vector<8x1xi32>
    %45 = arith.addi %43, %44 : vector<8x1xi32>
    %46 = vector.broadcast %45 : vector<8x1xi32> to vector<8x256xi32>
    %47 = arith.cmpi eq, %1, %46 : vector<8x256xi32>
    %48 = arith.ori %40, %47 : vector<8x256xi1>
    %49 = vector.extract_strided_slice %0 {offsets = [0, 6], sizes = [8, 1], strides = [1, 1]} : vector<8x8xi32> to vector<8x1xi32>
    %c8_i32_6 = arith.constant 8 : i32
    %50 = vector.broadcast %c8_i32_6 : i32 to vector<8x1xi32>
    %51 = arith.muli %49, %50 : vector<8x1xi32>
    %c6_i32 = arith.constant 6 : i32
    %52 = vector.broadcast %c6_i32 : i32 to vector<8x1xi32>
    %53 = arith.addi %51, %52 : vector<8x1xi32>
    %54 = vector.broadcast %53 : vector<8x1xi32> to vector<8x256xi32>
    %55 = arith.cmpi eq, %1, %54 : vector<8x256xi32>
    %56 = arith.ori %48, %55 : vector<8x256xi1>
    %57 = vector.extract_strided_slice %0 {offsets = [0, 7], sizes = [8, 1], strides = [1, 1]} : vector<8x8xi32> to vector<8x1xi32>
    %c8_i32_7 = arith.constant 8 : i32
    %58 = vector.broadcast %c8_i32_7 : i32 to vector<8x1xi32>
    %59 = arith.muli %57, %58 : vector<8x1xi32>
    %c7_i32 = arith.constant 7 : i32
    %60 = vector.broadcast %c7_i32 : i32 to vector<8x1xi32>
    %61 = arith.addi %59, %60 : vector<8x1xi32>
    %62 = vector.broadcast %61 : vector<8x1xi32> to vector<8x256xi32>
    %63 = arith.cmpi eq, %1, %62 : vector<8x256xi32>
    %64 = arith.ori %56, %63 : vector<8x256xi1>
    %65 = arith.extui %64 : vector<8x256xi1> to vector<8x256xi32>
    %66 = arith.sitofp %65 : vector<8x256xi32> to vector<8x256xf32>
    %67 = arith.truncf %66 : vector<8x256xf32> to vector<8x256xbf16>
    %c0_8 = arith.constant 0 : index
    %c0_9 = arith.constant 0 : index
    %68 = vector.load %arg3[%c0_8, %c0_9] : memref<528x128xbf16, #tpu.memory_space<vmem>>, vector<256x128xbf16>
    %cst = arith.constant dense<0.000000e+00> : vector<8x128xf32>
    %69 = tpu.matmul %67, %68, %cst {dimension_numbers = #tpu.dot_dimension_numbers<[1], [0], [0], [1], [0, 0, 1, 1], [], []>} : vector<8x256xbf16>, vector<256x128xbf16>, vector<8x128xf32> -> vector<8x128xf32>
    %c256 = arith.constant 256 : index
    %c0_10 = arith.constant 0 : index
    %70 = vector.load %arg3[%c256, %c0_10] : memref<528x128xbf16, #tpu.memory_space<vmem>>, vector<1x128xbf16>
    %71 = arith.extf %70 : vector<1x128xbf16> to vector<1x128xf32>
    %72 = vector.broadcast %71 : vector<1x128xf32> to vector<8x128xf32>
    %73 = arith.addf %69, %72 : vector<8x128xf32>
    %cst_11 = arith.constant 0.000000e+00 : f32
    %74 = vector.broadcast %cst_11 : f32 to vector<8x128xf32>
    %75 = arith.maximumf %73, %74 : vector<8x128xf32>
    %76 = arith.truncf %75 : vector<8x128xf32> to vector<8x128xbf16>
    %c264 = arith.constant 264 : index
    %c0_12 = arith.constant 0 : index
    %77 = vector.load %arg3[%c264, %c0_12] : memref<528x128xbf16, #tpu.memory_space<vmem>>, vector<128x128xbf16>
    %cst_13 = arith.constant dense<0.000000e+00> : vector<8x128xf32>
    %78 = tpu.matmul %76, %77, %cst_13 {dimension_numbers = #tpu.dot_dimension_numbers<[1], [0], [0], [1], [0, 0, 1, 1], [], []>} : vector<8x128xbf16>, vector<128x128xbf16>, vector<8x128xf32> -> vector<8x128xf32>
    %c0_14 = arith.constant 0 : index
    %c0_15 = arith.constant 0 : index
    %79 = vector.load %arg2[%c0_14, %c0_15] : memref<1x128xf32, #tpu.memory_space<vmem>>, vector<1x128xf32>
    %80 = vector.broadcast %79 : vector<1x128xf32> to vector<8x128xf32>
    %81 = arith.addf %78, %80 : vector<8x128xf32>
    %cst_16 = arith.constant 0.000000e+00 : f32
    %82 = vector.broadcast %cst_16 : f32 to vector<8x128xf32>
    %83 = arith.maximumf %81, %82 : vector<8x128xf32>
    %84 = arith.truncf %83 : vector<8x128xf32> to vector<8x128xbf16>
    %c392 = arith.constant 392 : index
    %c0_17 = arith.constant 0 : index
    %85 = vector.load %arg3[%c392, %c0_17] : memref<528x128xbf16, #tpu.memory_space<vmem>>, vector<128x128xbf16>
    %cst_18 = arith.constant dense<0.000000e+00> : vector<8x128xf32>
    %86 = tpu.matmul %84, %85, %cst_18 {dimension_numbers = #tpu.dot_dimension_numbers<[1], [0], [0], [1], [0, 0, 1, 1], [], []>} : vector<8x128xbf16>, vector<128x128xbf16>, vector<8x128xf32> -> vector<8x128xf32>
    %c520 = arith.constant 520 : index
    %c0_19 = arith.constant 0 : index
    %87 = vector.load %arg3[%c520, %c0_19] : memref<528x128xbf16, #tpu.memory_space<vmem>>, vector<1x128xbf16>
    %88 = arith.extf %87 : vector<1x128xbf16> to vector<1x128xf32>
    %89 = vector.broadcast %88 : vector<1x128xf32> to vector<8x128xf32>
    %90 = arith.addf %86, %89 : vector<8x128xf32>
    %c0_20 = arith.constant 0 : index
    %c0_21 = arith.constant 0 : index
    %91 = vector.load %arg4[%c0_20, %c0_21] : memref<8x128xf32, #tpu.memory_space<vmem>>, vector<8x128xf32>
    tpu.vector_store %arg4[%c0_20, %c0_21], %90 {strides = array<i32>} : memref<8x128xf32, #tpu.memory_space<vmem>>, vector<8x128xf32>,
    return
  }
  func.func @transform_0(%arg0: i32) -> (i32, i32) {
    %c0_i32 = arith.constant 0 : i32
    %c0_i32_0 = arith.constant 0 : i32
    return %arg0, %c0_i32 : i32, i32
  }
  func.func @transform_1(%arg0: i32) -> (i32, i32) {
    %c0_i32 = arith.constant 0 : i32
    %c0_i32_0 = arith.constant 0 : i32
    %c0_i32_1 = arith.constant 0 : i32
    return %c0_i32, %c0_i32_0 : i32, i32
  }
  func.func @transform_2(%arg0: i32) -> (i32, i32) {
    %c0_i32 = arith.constant 0 : i32
    %c0_i32_0 = arith.constant 0 : i32
    %c0_i32_1 = arith.constant 0 : i32
    return %c0_i32, %c0_i32_0 : i32, i32
  }
  func.func @transform_3(%arg0: i32) -> (i32, i32) {
    %c0_i32 = arith.constant 0 : i32
    %c0_i32_0 = arith.constant 0 : i32
    return %arg0, %c0_i32 : i32, i32
  }
}

</mosaic_0001>

<llo_original>
// kernel: tpu_custom_call.1
$region0: #{tpu_custom_call.1}
  #allocation0 [shape = 'u32[]', space=smem, size = 0x4, offset = 0x4, fixed_abs, tag = 'smem constant byte address 0x4 - core index']
  #allocation1 [shape = 'u32[144,128]{1,0:T(1,128)}', space=vmem, size = 0x12000, scoped, tag = 'internal scratch']
  %s0 = inlined_call_operand.hbm [shape: s32[8,8], index: 0, kind: input, shape index: {}]
  %s1 = inlined_call_operand.hbm [shape: f32[1,128], index: 1, kind: input, shape index: {}]
  %s2 = inlined_call_operand.hbm [shape: bf16[528,128], index: 2, kind: input, shape index: {}]
  %s3 = inlined_call_operand.hbm [shape: f32[8,128], index: 3, kind: output, shape index: {}]
  %s4 = sld [smem:[#allocation0]]
  $region34: #{tpu_custom_call.1} parent=0
    _
  %s6 = ssub.s32 1, %s4
  %s7 = scalar_select 0, %s6, %s4
  $region1: #{tpu_custom_call.1} parent=0
    #allocation2 [shape = 'u8[4096]{0}', space=vmem, size = 0x1000, scoped, tag = 'input window, operand 0, single buffered']
    #allocation3 [shape = 's32[1]{0}', space=sflag, size = 0x4, scoped, tag = 'scoped memory for tpu_custom_call.1']
    #allocation4 [shape = 's32[1]{0}', space=sflag, size = 0x4, scoped, tag = 'scoped memory for tpu_custom_call.1']
    #allocation5 [shape = 'u8[512]{0}', space=vmem, size = 0x400, scoped, tag = 'input window, operand 1, single buffered']
    #allocation6 [shape = 's32[1]{0}', space=sflag, size = 0x4, scoped, tag = 'scoped memory for tpu_custom_call.1']
    #allocation7 [shape = 'u8[135168]{0}', space=vmem, size = 0x21000, scoped, tag = 'input window, operand 2, single buffered']
    #allocation8 [shape = 'u8[4096]{0}', space=vmem, size = 0x1000, scoped, tag = 'output window, operand 0, single buffered']
    %8 = vsyncpa [#allocation3], 0
    %9 = vsyncpa [#allocation6], 0
    %10 = vsyncpa [#allocation4], 0
    // Predicated region
    $region2: #{tpu_custom_call.1} parent=1 // pred_check
      _
    $region3: #{tpu_custom_call.1} parent=1 // pred_check_branch
      %12 = sbr.rel (0) target = $region5
    $region4: #{tpu_custom_call.1} parent=1 // pred_region
      %s14 = ssub.s32 128, 128
      %15 = vsyncadd [#allocation3], %s14
      %s17 = sshll.u32 [#allocation2], 4
      %s18 = int_to_ptr.vmem [resolvable:$true] %s17
      %20 = dma.hbm_to_vmem [thread:$0]  %s0, 128, %s18, [#allocation3]
    $region5: #{tpu_custom_call.1} parent=1 // pred_fallthru
      _
    // Predicated region
    $region6: #{tpu_custom_call.1} parent=1 // pred_check
      _
    $region7: #{tpu_custom_call.1} parent=1 // pred_check_branch
      %22 = sbr.rel (0) target = $region9
    $region8: #{tpu_custom_call.1} parent=1 // pred_region
      %s24 = ssub.s32 16, 16
      %25 = vsyncadd [#allocation6], %s24
      %s27 = sshll.u32 [#allocation5], 4
      %s28 = int_to_ptr.vmem [resolvable:$true] %s27
      %30 = dma.hbm_to_vmem [thread:$0]  %s1, 16, %s28, [#allocation6]
    $region9: #{tpu_custom_call.1} parent=1 // pred_fallthru
      _
    // Predicated region
    $region10: #{tpu_custom_call.1} parent=1 // pred_check
      _
    $region11: #{tpu_custom_call.1} parent=1 // pred_check_branch
      %32 = sbr.rel (0) target = $region13
    $region12: #{tpu_custom_call.1} parent=1 // pred_region
      %s34 = ssub.s32 4224, 4224
      %35 = vsyncadd [#allocation6], %s34
      %s36 = sshll.u32 [#allocation7], 4
      %s37 = int_to_ptr.vmem [resolvable:$true] %s36
      %42 = dma.hbm_to_vmem [thread:$0]  %s2, 4224, %s37, [#allocation6], 64, 64, 4
    $region13: #{tpu_custom_call.1} parent=1 // pred_fallthru
      _
    // Predicated region
    $region14: #{tpu_custom_call.1} parent=1 // pred_check
      _
    $region15: #{tpu_custom_call.1} parent=1 // pred_check_branch
      %44 = sbr.rel (0) target = $region17
    $region16: #{tpu_custom_call.1} parent=1 // pred_region
      %45 = dma.done [#allocation3], 128
    $region17: #{tpu_custom_call.1} parent=1 // pred_fallthru
      _
    // Predicated region
    $region18: #{tpu_custom_call.1} parent=1 // pred_check
      _
    $region19: #{tpu_custom_call.1} parent=1 // pred_check_branch
      %47 = sbr.rel (0) target = $region21
    $region20: #{tpu_custom_call.1} parent=1 // pred_region
      %48 = dma.done [#allocation6], 16
    $region21: #{tpu_custom_call.1} parent=1 // pred_fallthru
      _
    // Predicated region
    $region22: #{tpu_custom_call.1} parent=1 // pred_check
      _
    $region23: #{tpu_custom_call.1} parent=1 // pred_check_branch
      %50 = sbr.rel (0) target = $region25
    $region24: #{tpu_custom_call.1} parent=1 // pred_region
      %51 = dma.done [#allocation6], 4224
    $region25: #{tpu_custom_call.1} parent=1 // pred_fallthru
      _
    %v53 = vld [vmem:[#allocation2] sm:$0xff]
    %v54 = vlaneseq
    %v55 = vand.u32 %v54, 127
    %v56 = vadd.s32 %v55, 128
    %v57 = vmul.u32 %v53, 8
    %58 = vset.pattern.permute.xlu0 0
    %59 = vperm.xlu0 %58, %v57
    %v60 = vpop.permute.xlu0 %59
    %vm61 = vcmp.eq.s32.totalorder %v55, %v60
    %vm62 = vcmp.eq.s32.totalorder %v56, %v60
    %v63 = vadd.s32 %v57, 1
    %64 = vset.pattern.permute.xlu0 1
    %65 = vperm.xlu0 %64, %v63
    %v66 = vpop.permute.xlu0 %65
    %vm67 = vcmp.eq.s32.totalorder %v55, %v66
    %vm68 = vcmp.eq.s32.totalorder %v56, %v66
    %vm69 = vmor %vm61, %vm67
    %vm70 = vmor %vm62, %vm68
    %v71 = vadd.s32 %v57, 2
    %72 = vset.pattern.permute.xlu0 2
    %73 = vperm.xlu0 %72, %v71
    %v74 = vpop.permute.xlu0 %73
    %vm75 = vcmp.eq.s32.totalorder %v55, %v74
    %vm76 = vcmp.eq.s32.totalorder %v56, %v74
    %vm77 = vmor %vm69, %vm75
    %vm78 = vmor %vm70, %vm76
    %v79 = vadd.s32 %v57, 3
    %80 = vset.pattern.permute.xlu0 3
    %81 = vperm.xlu0 %80, %v79
    %v82 = vpop.permute.xlu0 %81
    %vm83 = vcmp.eq.s32.totalorder %v55, %v82
    %vm84 = vcmp.eq.s32.totalorder %v56, %v82
    %vm85 = vmor %vm77, %vm83
    %vm86 = vmor %vm78, %vm84
    %v87 = vadd.s32 %v57, 4
    %88 = vset.pattern.permute.xlu0 4
    %89 = vperm.xlu0 %88, %v87
    %v90 = vpop.permute.xlu0 %89
    %vm91 = vcmp.eq.s32.totalorder %v55, %v90
    %vm92 = vcmp.eq.s32.totalorder %v56, %v90
    %vm93 = vmor %vm85, %vm91
    %vm94 = vmor %vm86, %vm92
    %v95 = vadd.s32 %v57, 5
    %96 = vset.pattern.permute.xlu0 5
    %97 = vperm.xlu0 %96, %v95
    %v98 = vpop.permute.xlu0 %97
    %vm99 = vcmp.eq.s32.totalorder %v55, %v98
    %vm100 = vcmp.eq.s32.totalorder %v56, %v98
    %vm101 = vmor %vm93, %vm99
    %vm102 = vmor %vm94, %vm100
    %v103 = vadd.s32 %v57, 6
    %104 = vset.pattern.permute.xlu0 6
    %105 = vperm.xlu0 %104, %v103
    %v106 = vpop.permute.xlu0 %105
    %vm107 = vcmp.eq.s32.totalorder %v55, %v106
    %vm108 = vcmp.eq.s32.totalorder %v56, %v106
    %vm109 = vmor %vm101, %vm107
    %vm110 = vmor %vm102, %vm108
    %v111 = vadd.s32 %v57, 7
    %112 = vset.pattern.permute.xlu0 7
    %113 = vperm.xlu0 %112, %v111
    %v114 = vpop.permute.xlu0 %113
    %vm115 = vcmp.eq.s32.totalorder %v55, %v114
    %vm116 = vcmp.eq.s32.totalorder %v56, %v114
    %vm117 = vmor %vm109, %vm115
    %vm118 = vmor %vm110, %vm116
    %v119 = vsel %vm117, 1, 0
    %v120 = vsel %vm118, 1, 0
    %v121 = vcvt.s32.f32 %v119
    %v122 = vcvt.s32.f32 %v120
    %v123 = vpack.c.bf16 %v121, %v121
    %v124 = vpack.c.bf16 %v122, %v122
    %v125 = vld [vmem:[#allocation7] sm:$0xf]
    %v126 = vld [vmem:[#allocation7 + $0x4] sm:$0xf]
    %v127 = vld [vmem:[#allocation7 + $0x8] sm:$0xf]
    %v128 = vld [vmem:[#allocation7 + $0xc] sm:$0xf]
    %v129 = vld [vmem:[#allocation7 + $0x10] sm:$0xf]
    %v130 = vld [vmem:[#allocation7 + $0x14] sm:$0xf]
    %v131 = vld [vmem:[#allocation7 + $0x18] sm:$0xf]
    %v132 = vld [vmem:[#allocation7 + $0x1c] sm:$0xf]
    %v133 = vld [vmem:[#allocation7 + $0x20] sm:$0xf]
    %v134 = vld [vmem:[#allocation7 + $0x24] sm:$0xf]
    %v135 = vld [vmem:[#allocation7 + $0x28] sm:$0xf]
    %v136 = vld [vmem:[#allocation7 + $0x2c] sm:$0xf]
    %v137 = vld [vmem:[#allocation7 + $0x30] sm:$0xf]
    %v138 = vld [vmem:[#allocation7 + $0x34] sm:$0xf]
    %v139 = vld [vmem:[#allocation7 + $0x38] sm:$0xf]
    %v140 = vld [vmem:[#allocation7 + $0x3c] sm:$0xf]
    %v141 = vld [vmem:[#allocation7 + $0x40] sm:$0xf]
    %v142 = vld [vmem:[#allocation7 + $0x44] sm:$0xf]
    %v143 = vld [vmem:[#allocation7 + $0x48] sm:$0xf]
    %v144 = vld [vmem:[#allocation7 + $0x4c] sm:$0xf]
    %v145 = vld [vmem:[#allocation7 + $0x50] sm:$0xf]
    %v146 = vld [vmem:[#allocation7 + $0x54] sm:$0xf]
    %v147 = vld [vmem:[#allocation7 + $0x58] sm:$0xf]
    %v148 = vld [vmem:[#allocation7 + $0x5c] sm:$0xf]
    %v149 = vld [vmem:[#allocation7 + $0x60] sm:$0xf]
    %v150 = vld [vmem:[#allocation7 + $0x64] sm:$0xf]
    %v151 = vld [vmem:[#allocation7 + $0x68] sm:$0xf]
    %v152 = vld [vmem:[#allocation7 + $0x6c] sm:$0xf]
    %v153 = vld [vmem:[#allocation7 + $0x70] sm:$0xf]
    %v154 = vld [vmem:[#allocation7 + $0x74] sm:$0xf]
    %v155 = vld [vmem:[#allocation7 + $0x78] sm:$0xf]
    %v156 = vld [vmem:[#allocation7 + $0x7c] sm:$0xf]
    %v157 = vld [vmem:[#allocation7 + $0x80] sm:$0x1]
    %v158 = vunpack.c.l.bf16 %v157
    %v159 = vlaneseq
    %v160 = vshrl.u32 %v159, 7
    %v161 = vsub.s32 0, %v160
    %v162 = vrot.slane %v158, %v161
    %v195 = vunpack.c.l.b16 %v125
    %v196 = vunpack.c.l.b16 %v126
    %v197 = vunpack.c.l.b16 %v127
    %v198 = vunpack.c.l.b16 %v128
    %v199 = vunpack.c.l.b16 %v129
    %v200 = vunpack.c.l.b16 %v130
    %v201 = vunpack.c.l.b16 %v131
    %v202 = vunpack.c.l.b16 %v132
    %v203 = vunpack.c.l.b16 %v133
    %v204 = vunpack.c.l.b16 %v134
    %v205 = vunpack.c.l.b16 %v135
    %v206 = vunpack.c.l.b16 %v136
    %v207 = vunpack.c.l.b16 %v137
    %v208 = vunpack.c.l.b16 %v138
    %v209 = vunpack.c.l.b16 %v139
    %v210 = vunpack.c.l.b16 %v140
    %v211 = vunpack.c.l.b16 %v141
    %v212 = vunpack.c.l.b16 %v142
    %v213 = vunpack.c.l.b16 %v143
    %v214 = vunpack.c.l.b16 %v144
    %v215 = vunpack.c.l.b16 %v145
    %v216 = vunpack.c.l.b16 %v146
    %v217 = vunpack.c.l.b16 %v147
    %v218 = vunpack.c.l.b16 %v148
    %v219 = vunpack.c.l.b16 %v149
    %v220 = vunpack.c.l.b16 %v150
    %v221 = vunpack.c.l.b16 %v151
    %v222 = vunpack.c.l.b16 %v152
    %v223 = vunpack.c.l.b16 %v153
    %v224 = vunpack.c.l.b16 %v154
    %v225 = vunpack.c.l.b16 %v155
    %v226 = vunpack.c.l.b16 %v156
    %v227 = vpack.c.b16 %v196, %v195
    %v228 = vpack.c.b16 %v198, %v197
    %v229 = vpack.c.b16 %v200, %v199
    %v230 = vpack.c.b16 %v202, %v201
    %v231 = vpack.c.b16 %v204, %v203
    %v232 = vpack.c.b16 %v206, %v205
    %v233 = vpack.c.b16 %v208, %v207
    %v234 = vpack.c.b16 %v210, %v209
    %v235 = vpack.c.b16 %v212, %v211
    %v236 = vpack.c.b16 %v214, %v213
    %v237 = vpack.c.b16 %v216, %v215
    %v238 = vpack.c.b16 %v218, %v217
    %v239 = vpack.c.b16 %v220, %v219
    %v240 = vpack.c.b16 %v222, %v221
    %v241 = vpack.c.b16 %v224, %v223
    %v242 = vpack.c.b16 %v226, %v225
    %259 = vmatprep.subr.bf16.mxu0 0
    %260 = vmatpush1.bf16.msra.mxu0 %v227
    %261 = vmatprep.subr.bf16.mxu0 0
    %262 = vmatpush1.bf16.msra.mxu0 %v228
    %263 = vmatprep.subr.bf16.mxu0 0
    %264 = vmatpush1.bf16.msra.mxu0 %v229
    %265 = vmatprep.subr.bf16.mxu0 0
    %266 = vmatpush1.bf16.msra.mxu0 %v230
    %267 = vmatprep.subr.bf16.mxu0 0
    %268 = vmatpush1.bf16.msra.mxu0 %v231
    %269 = vmatprep.subr.bf16.mxu0 0
    %270 = vmatpush1.bf16.msra.mxu0 %v232
    %271 = vmatprep.subr.bf16.mxu0 0
    %272 = vmatpush1.bf16.msra.mxu0 %v233
    %273 = vmatprep.subr.bf16.mxu0 0
    %274 = vmatpush1.bf16.msra.mxu0 %v234
    %275 = vmatprep.subr.bf16.mxu0 0
    %276 = vmatpush1.bf16.msra.mxu0 %v235
    %277 = vmatprep.subr.bf16.mxu0 0
    %278 = vmatpush1.bf16.msra.mxu0 %v236
    %279 = vmatprep.subr.bf16.mxu0 0
    %280 = vmatpush1.bf16.msra.mxu0 %v237
    %281 = vmatprep.subr.bf16.mxu0 0
    %282 = vmatpush1.bf16.msra.mxu0 %v238
    %283 = vmatprep.subr.bf16.mxu0 0
    %284 = vmatpush1.bf16.msra.mxu0 %v239
    %285 = vmatprep.subr.bf16.mxu0 0
    %286 = vmatpush1.bf16.msra.mxu0 %v240
    %287 = vmatprep.subr.bf16.mxu0 0
    %288 = vmatpush1.bf16.msra.mxu0 %v241
    %289 = vmatprep.subr.bf16.mxu0 0
    %290 = vmatpush1.bf16.msra.mxu0 %v242
    %291 = vmatprep.mubr.bf16.mxu0 %v124
    %292 = vmatmul.mubr.bf16.gmra.mrb[0].mxu0 %v123
    %v293 = vpop.f32.mrb[0].mxu0
    %v294 = vadd.f32 %v162, %v293
    %v295 = vpop.f32.mrb[0].mxu0
    %v296 = vpop.f32.mrb[0].mxu0
    %v297 = vpop.f32.mrb[0].mxu0
    %298 = vdwg.mxu0
    %v299 = vmax.f32 %v294, 0.0
    %v300 = vpack.c.bf16 %v299, %v299
    %v301 = vld [vmem:[#allocation7 + $0x84] sm:$0xf]
    %v302 = vld [vmem:[#allocation7 + $0x88] sm:$0xf]
    %v303 = vld [vmem:[#allocation7 + $0x8c] sm:$0xf]
    %v304 = vld [vmem:[#allocation7 + $0x90] sm:$0xf]
    %v305 = vld [vmem:[#allocation7 + $0x94] sm:$0xf]
    %v306 = vld [vmem:[#allocation7 + $0x98] sm:$0xf]
    %v307 = vld [vmem:[#allocation7 + $0x9c] sm:$0xf]
    %v308 = vld [vmem:[#allocation7 + $0xa0] sm:$0xf]
    %v309 = vld [vmem:[#allocation7 + $0xa4] sm:$0xf]
    %v310 = vld [vmem:[#allocation7 + $0xa8] sm:$0xf]
    %v311 = vld [vmem:[#allocation7 + $0xac] sm:$0xf]
    %v312 = vld [vmem:[#allocation7 + $0xb0] sm:$0xf]
    %v313 = vld [vmem:[#allocation7 + $0xb4] sm:$0xf]
    %v314 = vld [vmem:[#allocation7 + $0xb8] sm:$0xf]
    %v315 = vld [vmem:[#allocation7 + $0xbc] sm:$0xf]
    %v316 = vld [vmem:[#allocation7 + $0xc0] sm:$0xf]
    %v317 = vld [vmem:[#allocation5] sm:$0x1]
    %v319 = vlaneseq
    %v320 = vshrl.u32 %v319, 7
    %v321 = vsub.s32 0, %v320
    %v322 = vrot.slane %v317, %v321
    %v340 = vunpack.c.l.b16 %v301
    %v341 = vunpack.c.l.b16 %v302
    %v342 = vunpack.c.l.b16 %v303
    %v343 = vunpack.c.l.b16 %v304
    %v344 = vunpack.c.l.b16 %v305
    %v345 = vunpack.c.l.b16 %v306
    %v346 = vunpack.c.l.b16 %v307
    %v347 = vunpack.c.l.b16 %v308
    %v348 = vunpack.c.l.b16 %v309
    %v349 = vunpack.c.l.b16 %v310
    %v350 = vunpack.c.l.b16 %v311
    %v351 = vunpack.c.l.b16 %v312
    %v352 = vunpack.c.l.b16 %v313
    %v353 = vunpack.c.l.b16 %v314
    %v354 = vunpack.c.l.b16 %v315
    %v355 = vunpack.c.l.b16 %v316
    %v356 = vpack.c.b16 %v341, %v340
    %v357 = vpack.c.b16 %v343, %v342
    %v358 = vpack.c.b16 %v345, %v344
    %v359 = vpack.c.b16 %v347, %v346
    %v360 = vpack.c.b16 %v349, %v348
    %v361 = vpack.c.b16 %v351, %v350
    %v362 = vpack.c.b16 %v353, %v352
    %v363 = vpack.c.b16 %v355, %v354
    %372 = vmatprep.subr.bf16.mxu0 0
    %373 = vmatpush1.bf16.msra.mxu0 %v356
    %374 = vmatprep.subr.bf16.mxu0 0
    %375 = vmatpush1.bf16.msra.mxu0 %v357
    %376 = vmatprep.subr.bf16.mxu0 0
    %377 = vmatpush1.bf16.msra.mxu0 %v358
    %378 = vmatprep.subr.bf16.mxu0 0
    %379 = vmatpush1.bf16.msra.mxu0 %v359
    %380 = vmatprep.subr.bf16.mxu0 0
    %381 = vmatpush1.bf16.msra.mxu0 %v360
    %382 = vmatprep.subr.bf16.mxu0 0
    %383 = vmatpush1.bf16.msra.mxu0 %v361
    %384 = vmatprep.subr.bf16.mxu0 0
    %385 = vmatpush1.bf16.msra.mxu0 %v362
    %386 = vmatprep.subr.bf16.mxu0 0
    %387 = vmatpush1.bf16.msra.mxu0 %v363
    %388 = vmatprep.subr.bf16.mxu0 0
    %389 = vmatpush1.bf16.msra.mxu0 0
    %390 = vmatprep.subr.bf16.mxu0 0
    %391 = vmatpush1.bf16.msra.mxu0 0
    %392 = vmatprep.subr.bf16.mxu0 0
    %393 = vmatpush1.bf16.msra.mxu0 0
    %394 = vmatprep.subr.bf16.mxu0 0
    %395 = vmatpush1.bf16.msra.mxu0 0
    %396 = vmatprep.subr.bf16.mxu0 0
    %397 = vmatpush1.bf16.msra.mxu0 0
    %398 = vmatprep.subr.bf16.mxu0 0
    %399 = vmatpush1.bf16.msra.mxu0 0
    %400 = vmatprep.subr.bf16.mxu0 0
    %401 = vmatpush1.bf16.msra.mxu0 0
    %402 = vmatprep.subr.bf16.mxu0 0
    %403 = vmatpush1.bf16.msra.mxu0 0
    %404 = vmatprep.mubr.bf16.mxu0 0
    %405 = vmatmul.mubr.bf16.gmra.mrb[0].mxu0 %v300
    %v406 = vpop.f32.mrb[0].mxu0
    %v407 = vadd.f32 %v322, %v406
    %v408 = vpop.f32.mrb[0].mxu0
    %v409 = vpop.f32.mrb[0].mxu0
    %v410 = vpop.f32.mrb[0].mxu0
    %411 = vdwg.mxu0
    %v412 = vmax.f32 %v407, 0.0
    %v413 = vpack.c.bf16 %v412, %v412
    %v414 = vld [vmem:[#allocation7 + $0xc4] sm:$0xf]
    %v415 = vld [vmem:[#allocation7 + $0xc8] sm:$0xf]
    %v416 = vld [vmem:[#allocation7 + $0xcc] sm:$0xf]
    %v417 = vld [vmem:[#allocation7 + $0xd0] sm:$0xf]
    %v418 = vld [vmem:[#allocation7 + $0xd4] sm:$0xf]
    %v419 = vld [vmem:[#allocation7 + $0xd8] sm:$0xf]
    %v420 = vld [vmem:[#allocation7 + $0xdc] sm:$0xf]
    %v421 = vld [vmem:[#allocation7 + $0xe0] sm:$0xf]
    %v422 = vld [vmem:[#allocation7 + $0xe4] sm:$0xf]
    %v423 = vld [vmem:[#allocation7 + $0xe8] sm:$0xf]
    %v424 = vld [vmem:[#allocation7 + $0xec] sm:$0xf]
    %v425 = vld [vmem:[#allocation7 + $0xf0] sm:$0xf]
    %v426 = vld [vmem:[#allocation7 + $0xf4] sm:$0xf]
    %v427 = vld [vmem:[#allocation7 + $0xf8] sm:$0xf]
    %v428 = vld [vmem:[#allocation7 + $0xfc] sm:$0xf]
    %v429 = vld [vmem:[#allocation7 + $0x100] sm:$0xf]
    %v430 = vld [vmem:[#allocation7 + $0x104] sm:$0x1]
    %v431 = vunpack.c.l.bf16 %v430
    %v432 = vlaneseq
    %v433 = vshrl.u32 %v432, 7
    %v434 = vsub.s32 0, %v433
    %v435 = vrot.slane %v431, %v434
    %v452 = vunpack.c.l.b16 %v414
    %v453 = vunpack.c.l.b16 %v415
    %v454 = vunpack.c.l.b16 %v416
    %v455 = vunpack.c.l.b16 %v417
    %v456 = vunpack.c.l.b16 %v418
    %v457 = vunpack.c.l.b16 %v419
    %v458 = vunpack.c.l.b16 %v420
    %v459 = vunpack.c.l.b16 %v421
    %v460 = vunpack.c.l.b16 %v422
    %v461 = vunpack.c.l.b16 %v423
    %v462 = vunpack.c.l.b16 %v424
    %v463 = vunpack.c.l.b16 %v425
    %v464 = vunpack.c.l.b16 %v426
    %v465 = vunpack.c.l.b16 %v427
    %v466 = vunpack.c.l.b16 %v428
    %v467 = vunpack.c.l.b16 %v429
    %v468 = vpack.c.b16 %v453, %v452
    %v469 = vpack.c.b16 %v455, %v454
    %v470 = vpack.c.b16 %v457, %v456
    %v471 = vpack.c.b16 %v459, %v458
    %v472 = vpack.c.b16 %v461, %v460
    %v473 = vpack.c.b16 %v463, %v462
    %v474 = vpack.c.b16 %v465, %v464
    %v475 = vpack.c.b16 %v467, %v466
    %484 = vmatprep.subr.bf16.mxu0 0
    %485 = vmatpush1.bf16.msra.mxu0 %v468
    %486 = vmatprep.subr.bf16.mxu0 0
    %487 = vmatpush1.bf16.msra.mxu0 %v469
    %488 = vmatprep.subr.bf16.mxu0 0
    %489 = vmatpush1.bf16.msra.mxu0 %v470
    %490 = vmatprep.subr.bf16.mxu0 0
    %491 = vmatpush1.bf16.msra.mxu0 %v471
    %492 = vmatprep.subr.bf16.mxu0 0
    %493 = vmatpush1.bf16.msra.mxu0 %v472
    %494 = vmatprep.subr.bf16.mxu0 0
    %495 = vmatpush1.bf16.msra.mxu0 %v473
    %496 = vmatprep.subr.bf16.mxu0 0
    %497 = vmatpush1.bf16.msra.mxu0 %v474
    %498 = vmatprep.subr.bf16.mxu0 0
    %499 = vmatpush1.bf16.msra.mxu0 %v475
    %500 = vmatprep.subr.bf16.mxu0 0
    %501 = vmatpush1.bf16.msra.mxu0 0
    %502 = vmatprep.subr.bf16.mxu0 0
    %503 = vmatpush1.bf16.msra.mxu0 0
    %504 = vmatprep.subr.bf16.mxu0 0
    %505 = vmatpush1.bf16.msra.mxu0 0
    %506 = vmatprep.subr.bf16.mxu0 0
    %507 = vmatpush1.bf16.msra.mxu0 0
    %508 = vmatprep.subr.bf16.mxu0 0
    %509 = vmatpush1.bf16.msra.mxu0 0
    %510 = vmatprep.subr.bf16.mxu0 0
    %511 = vmatpush1.bf16.msra.mxu0 0
    %512 = vmatprep.subr.bf16.mxu0 0
    %513 = vmatpush1.bf16.msra.mxu0 0
    %514 = vmatprep.subr.bf16.mxu0 0
    %515 = vmatpush1.bf16.msra.mxu0 0
    %516 = vmatprep.mubr.bf16.mxu0 0
    %517 = vmatmul.mubr.bf16.gmra.mrb[0].mxu0 %v413
    %v518 = vpop.f32.mrb[0].mxu0
    %v519 = vadd.f32 %v435, %v518
    %v520 = vpop.f32.mrb[0].mxu0
    %v521 = vpop.f32.mrb[0].mxu0
    %v522 = vpop.f32.mrb[0].mxu0
    %523 = vdwg.mxu0
    %524 = vst [vmem:[#allocation8] sm:$0xff] %v519
    // Predicated region
    $region26: #{tpu_custom_call.1} parent=1 // pred_check
      _
    $region27: #{tpu_custom_call.1} parent=1 // pred_check_branch
      %526 = sbr.rel (0) target = $region29
    $region28: #{tpu_custom_call.1} parent=1 // pred_region
      %s528 = ssub.s32 128, 128
      %529 = vsyncadd [#allocation4], %s528
      %s531 = sshll.u32 [#allocation8], 4
      %s532 = int_to_ptr.vmem [resolvable:$true] %s531
      %534 = dma.vmem_to_hbm [thread:$0]  %s532, 128, %s3, [#allocation4]
    $region29: #{tpu_custom_call.1} parent=1 // pred_fallthru
      _
    // Predicated region
    $region30: #{tpu_custom_call.1} parent=1 // pred_check
      _
    $region31: #{tpu_custom_call.1} parent=1 // pred_check_branch
      %536 = sbr.rel (0) target = $region33
    $region32: #{tpu_custom_call.1} parent=1 // pred_region
      %537 = dma.done [#allocation4], 128
    $region33: #{tpu_custom_call.1} parent=1 // pred_fallthru
      _
    %538 = vsyncpa [#allocation3], 1
    %539 = vsyncpa [#allocation6], 1
    %540 = vsyncpa [#allocation4], 1

</llo_original>
